<compile_context>
chip_gen: v7x
topology: tpu7x:2x2x1
jax: 0.10.0
libtpu: 0.0.40
codegen_flags: <defaults>
</compile_context>

<pallas_src>
import math
import jax
import jax.numpy as jnp
from jax import lax
from jax.experimental import pallas as pl
from jax.experimental.pallas import tpu as pltpu

# ---------------- configuration (small shapes consistent with the module) ----------------
B = 2          # batch
T = 16         # sequence length
C_IN = 32      # in_channels
C_OUT = 32     # out_channels
K = 3          # kernel_size (padding = K // 2 -> "same")
EPS = 1e-5     # torch.nn.LayerNorm default eps


# ---------------------------------- Pallas kernel ----------------------------------
def conv_relu_norm_kernel(x_ref, w_ref, vec_ref, o_ref):
    """x_ref:[Bblk,T,Cin]  w_ref:[K,Cin,Cout]  vec_ref:[3,Cout]  o_ref:[Bblk,T,Cout]"""
    f32 = jnp.float32
    bblk, tlen, _ = x_ref.shape
    ksz = w_ref.shape[0]
    pad = ksz // 2

    # packed per-channel vectors: row 0 = conv bias, row 1 = LN gamma, row 2 = LN beta
    bias = vec_ref[0:1, :]            # [1, Cout]
    gamma = vec_ref[1:2, :]
    beta = vec_ref[2:3, :]

    # Shift-validity masks for the zero-padded taps — hoisted out of the batch loop.
    tcol = lax.broadcasted_iota(jnp.int32, (tlen, 1), 0)
    tap_masks = []
    for k in range(ksz):
        d = k - pad                               # tap reads x[t + d]
        if d == 0:
            tap_masks.append(None)
        elif d < 0:
            tap_masks.append((tcol >= -d).astype(f32))
        else:
            tap_masks.append((tcol <= tlen - 1 - d).astype(f32))

    # Static unroll over the (tiny) batch block: with batch_block = B this folds the whole
    # batch into a single grid step (no per-step pipeline overhead on 1-TC chips).
    for b in range(bblk):
        xb = x_ref[b]                                           # [T, Cin]
        # --- Conv1d, "same" padding: 3-tap matmul-accumulate (independent MXU pushes) ---
        y = bias
        for k in range(ksz):
            d = k - pad
            if d == 0:
                tap = xb
            elif d < 0:
                tap = pltpu.roll(xb, -d, axis=0) * tap_masks[k]          # x[t + d], d < 0
            else:
                tap = pltpu.roll(xb, tlen - d, axis=0) * tap_masks[k]    # x[t + d], d > 0
            y = y + jnp.dot(tap, w_ref[k], preferred_element_type=f32)  # [T, Cout]

        # --- ReLU ---
        y = jnp.maximum(y, 0.0)

        # --- LayerNorm over the channel dim (PyTorch: transpose(1,2) -> LN(C) -> back) ---
        mu = jnp.mean(y, axis=-1, keepdims=True)
        var = jnp.mean(jnp.square(y - mu), axis=-1, keepdims=True)
        o_ref[b] = ((y - mu) * lax.rsqrt(var + EPS) * gamma + beta).astype(o_ref.dtype)


# ---------------------------------- wrapper (glue) ----------------------------------
def conv_relu_norm_forward(signal, conv_weight, conv_bias, ln_gamma, ln_beta,
                           *, batch_block=None):
    """signal: [B, Cin, T] (PyTorch NCT layout). conv_weight: [Cout, Cin, K] (PyTorch).
    Returns [B, Cout, T].  batch_block=None folds the batch into one grid step (best on
    1-TC v5e/v6e); batch_block=1 keeps a parallel batch grid axis for v7x's 2 TCs."""
    f32 = jnp.float32
    bsz, cin, tlen = signal.shape
    cout, _, ksz = conv_weight.shape
    if batch_block is None:
        batch_block = bsz
    assert bsz % batch_block == 0

    # ---- trace-time packing (free) ----
    x = jnp.transpose(signal, (0, 2, 1)).astype(f32)                 # [B, T, Cin] channel-last
    w = jnp.transpose(conv_weight, (2, 1, 0)).astype(f32)            # [K, Cin, Cout] tap-major
    vec = jnp.stack([conv_bias, ln_gamma, ln_beta]).astype(f32)      # [3, Cout] packed slab

    grid = (bsz // batch_block,)
    out = pl.pallas_call(
        conv_relu_norm_kernel,
        out_shape=jax.ShapeDtypeStruct((bsz, tlen, cout), f32),
        grid=grid,
        in_specs=[
            pl.BlockSpec((batch_block, tlen, cin), lambda i: (i, 0, 0)),   # x (batched)
            pl.BlockSpec((ksz, cin, cout), lambda i: (0, 0, 0)),           # conv weight (shared)
            pl.BlockSpec((3, cout), lambda i: (0, 0)),                     # bias/gamma/beta slab
        ],
        out_specs=pl.BlockSpec((batch_block, tlen, cout), lambda i: (i, 0, 0)),
        # independent batch blocks -> "parallel" shards the grid across v7x's two TCs;
        # with batch_block = B the grid has a single step so this is a no-op on v5e/v6e.
        compiler_params=pltpu.CompilerParams(dimension_semantics=("parallel",)),
    )(x, w, vec)

    return jnp.transpose(out, (0, 2, 1)).astype(signal.dtype)        # back to [B, Cout, T]


# ------------------------------ pure-JAX reference ------------------------------
def ref_forward(signal, conv_weight, conv_bias, ln_gamma, ln_beta):
    pad = conv_weight.shape[-1] // 2
    x = signal.astype(jnp.float32)
    y = lax.conv_general_dilated(
        x, conv_weight.astype(jnp.float32),
        window_strides=(1,), padding=[(pad, pad)],
        dimension_numbers=("NCH", "OIH", "NCH"),
        precision=lax.Precision.HIGHEST)
    y = y + conv_bias[None, :, None]
    y = jnp.maximum(y, 0.0)
    y = jnp.transpose(y, (0, 2, 1))                                   # [B, T, C]
    mu = jnp.mean(y, axis=-1, keepdims=True)
    var = jnp.mean((y - mu) ** 2, axis=-1, keepdims=True)
    y = (y - mu) / jnp.sqrt(var + EPS) * ln_gamma + ln_beta
    return jnp.transpose(y, (0, 2, 1)).astype(signal.dtype)


if __name__ == "__main__":
    key = jax.random.PRNGKey(0)
    k1, k2, k3, k4, k5 = jax.random.split(key, 5)
    signal = jax.random.normal(k1, (B, C_IN, T), dtype=jnp.float32)
    conv_weight = (jax.random.normal(k2, (C_OUT, C_IN, K))
                   * (1.0 / math.sqrt(C_IN * K))).astype(jnp.float32)
    conv_bias = (0.02 * jax.random.normal(k3, (C_OUT,))).astype(jnp.float32)
    ln_gamma = (1.0 + 0.1 * jax.random.normal(k4, (C_OUT,))).astype(jnp.float32)
    ln_beta = (0.02 * jax.random.normal(k5, (C_OUT,))).astype(jnp.float32)

    ref = ref_forward(signal, conv_weight, conv_bias, ln_gamma, ln_beta)

    # Path 1 (default): batch folded into a single grid step (v5e / v6e: 1 TensorCore).
    out_fold = conv_relu_norm_forward(signal, conv_weight, conv_bias, ln_gamma, ln_beta)
    jax.block_until_ready(out_fold)
    err_fold = float(jnp.max(jnp.abs(out_fold - ref)))
    assert out_fold.shape == (B, C_OUT, T), out_fold.shape
    assert err_fold < 2e-3, f"batch-folded path mismatch vs reference: {err_fold}"

    # Path 2: batch-parallel grid (v7x: 2 TensorCores) — same kernel, batch_block=1.
    out_par = conv_relu_norm_forward(signal, conv_weight, conv_bias, ln_gamma, ln_beta,
                                     batch_block=1)
    jax.block_until_ready(out_par)
    err_par = float(jnp.max(jnp.abs(out_par - ref)))
    assert out_par.shape == (B, C_OUT, T), out_par.shape
    assert err_par < 2e-3, f"batch-parallel path mismatch vs reference: {err_par}"

    print("KERNEL_OK")
</pallas_src>

<mosaic_0001>
module attributes {stable_mosaic.version = 11 : i64} {
  func.func @conv_relu_norm_kernel(%arg0: i32, %arg1: memref<2x16x32xf32, #tpu.memory_space<vmem>>, %arg2: memref<3x32x32xf32, #tpu.memory_space<vmem>>, %arg3: memref<3x32xf32, #tpu.memory_space<vmem>>, %arg4: memref<2x16x32xf32, #tpu.memory_space<vmem>>) attributes {dimension_semantics = [#tpu.dimension_semantics<parallel>], iteration_bounds = array<i64: 1>, scalar_prefetch = 0 : i64, scratch_operands = 0 : i64, tpu.core_type = #tpu.core_type<tc>, window_params = [{transform_indices = @transform_0, window_bounds = array<i64: 2, 16, 32>}, {pipeline_mode = #tpu.pipeline_mode<synchronous>, transform_indices = @transform_1, window_bounds = array<i64: 3, 32, 32>}, {pipeline_mode = #tpu.pipeline_mode<synchronous>, transform_indices = @transform_2, window_bounds = array<i64: 3, 32>}, {transform_indices = @transform_3, window_bounds = array<i64: 2, 16, 32>}]} {
    %c0 = arith.constant 0 : index
    %c0_0 = arith.constant 0 : index
    %0 = vector.load %arg3[%c0, %c0_0] : memref<3x32xf32, #tpu.memory_space<vmem>>, vector<1x32xf32>
    %c1 = arith.constant 1 : index
    %c0_1 = arith.constant 0 : index
    %1 = vector.load %arg3[%c1, %c0_1] : memref<3x32xf32, #tpu.memory_space<vmem>>, vector<1x32xf32>
    %c2 = arith.constant 2 : index
    %c0_2 = arith.constant 0 : index
    %2 = vector.load %arg3[%c2, %c0_2] : memref<3x32xf32, #tpu.memory_space<vmem>>, vector<1x32xf32>
    %3 = tpu.iota {dimensions = array<i32: 0>} : vector<16x1xi32>
    %c1_i32 = arith.constant 1 : i32
    %4 = vector.broadcast %c1_i32 : i32 to vector<16x1xi32>
    %5 = arith.cmpi sge, %3, %4 : vector<16x1xi32>
    %6 = arith.extui %5 : vector<16x1xi1> to vector<16x1xi32>
    %7 = arith.sitofp %6 : vector<16x1xi32> to vector<16x1xf32>
    %c14_i32 = arith.constant 14 : i32
    %8 = vector.broadcast %c14_i32 : i32 to vector<16x1xi32>
    %9 = arith.cmpi sle, %3, %8 : vector<16x1xi32>
    %10 = arith.extui %9 : vector<16x1xi1> to vector<16x1xi32>
    %11 = arith.sitofp %10 : vector<16x1xi32> to vector<16x1xf32>
    %c0_3 = arith.constant 0 : index
    %c0_4 = arith.constant 0 : index
    %c0_5 = arith.constant 0 : index
    %12 = vector.load %arg1[%c0_3, %c0_4, %c0_5] : memref<2x16x32xf32, #tpu.memory_space<vmem>>, vector<1x16x32xf32>
    %13 = vector.shape_cast %12 : vector<1x16x32xf32> to vector<16x32xf32>
    %c1_i32_6 = arith.constant 1 : i32
    %14 = tpu.dynamic_rotate %13 by %c1_i32_6 dim 0 : vector<16x32xf32>, i32 -> vector<16x32xf32>
    %15 = vector.broadcast %7 : vector<16x1xf32> to vector<16x32xf32>
    %16 = arith.mulf %14, %15 : vector<16x32xf32>
    %c0_7 = arith.constant 0 : index
    %c0_8 = arith.constant 0 : index
    %c0_9 = arith.constant 0 : index
    %17 = vector.load %arg2[%c0_7, %c0_8, %c0_9] : memref<3x32x32xf32, #tpu.memory_space<vmem>>, vector<1x32x32xf32>
    %18 = vector.shape_cast %17 : vector<1x32x32xf32> to vector<32x32xf32>
    %cst = arith.constant dense<0.000000e+00> : vector<16x32xf32>
    %19 = tpu.matmul %16, %18, %cst {dimension_numbers = #tpu.dot_dimension_numbers<[1], [0], [0], [1], [0, 0, 1, 1], [], []>} : vector<16x32xf32>, vector<32x32xf32>, vector<16x32xf32> -> vector<16x32xf32>
    %20 = vector.broadcast %0 : vector<1x32xf32> to vector<16x32xf32>
    %21 = arith.addf %20, %19 : vector<16x32xf32>
    %c1_10 = arith.constant 1 : index
    %c0_11 = arith.constant 0 : index
    %c0_12 = arith.constant 0 : index
    %22 = vector.load %arg2[%c1_10, %c0_11, %c0_12] : memref<3x32x32xf32, #tpu.memory_space<vmem>>, vector<1x32x32xf32>
    %23 = vector.shape_cast %22 : vector<1x32x32xf32> to vector<32x32xf32>
    %cst_13 = arith.constant dense<0.000000e+00> : vector<16x32xf32>
    %24 = tpu.matmul %13, %23, %cst_13 {dimension_numbers = #tpu.dot_dimension_numbers<[1], [0], [0], [1], [0, 0, 1, 1], [], []>} : vector<16x32xf32>, vector<32x32xf32>, vector<16x32xf32> -> vector<16x32xf32>
    %25 = arith.addf %21, %24 : vector<16x32xf32>
    %c15_i32 = arith.constant 15 : i32
    %26 = tpu.dynamic_rotate %13 by %c15_i32 dim 0 : vector<16x32xf32>, i32 -> vector<16x32xf32>
    %27 = vector.broadcast %11 : vector<16x1xf32> to vector<16x32xf32>
    %28 = arith.mulf %26, %27 : vector<16x32xf32>
    %c2_14 = arith.constant 2 : index
    %c0_15 = arith.constant 0 : index
    %c0_16 = arith.constant 0 : index
    %29 = vector.load %arg2[%c2_14, %c0_15, %c0_16] : memref<3x32x32xf32, #tpu.memory_space<vmem>>, vector<1x32x32xf32>
    %30 = vector.shape_cast %29 : vector<1x32x32xf32> to vector<32x32xf32>
    %cst_17 = arith.constant dense<0.000000e+00> : vector<16x32xf32>
    %31 = tpu.matmul %28, %30, %cst_17 {dimension_numbers = #tpu.dot_dimension_numbers<[1], [0], [0], [1], [0, 0, 1, 1], [], []>} : vector<16x32xf32>, vector<32x32xf32>, vector<16x32xf32> -> vector<16x32xf32>
    %32 = arith.addf %25, %31 : vector<16x32xf32>
    %cst_18 = arith.constant 0.000000e+00 : f32
    %33 = vector.broadcast %cst_18 : f32 to vector<16x32xf32>
    %34 = arith.maximumf %32, %33 : vector<16x32xf32>
    %cst_19 = arith.constant dense<0.000000e+00> : vector<16xf32>
    %35 = vector.multi_reduction <add>, %34, %cst_19 [1] : vector<16x32xf32> to vector<16xf32>
    %36 = vector.shape_cast %35 : vector<16xf32> to vector<16x1xf32>
    %cst_20 = arith.constant 3.200000e+01 : f32
    %37 = vector.broadcast %cst_20 : f32 to vector<16x1xf32>
    %38 = arith.divf %36, %37 : vector<16x1xf32>
    %39 = vector.broadcast %38 : vector<16x1xf32> to vector<16x32xf32>
    %40 = arith.subf %34, %39 : vector<16x32xf32>
    %41 = arith.mulf %40, %40 : vector<16x32xf32>
    %cst_21 = arith.constant dense<0.000000e+00> : vector<16xf32>
    %42 = vector.multi_reduction <add>, %41, %cst_21 [1] : vector<16x32xf32> to vector<16xf32>
    %43 = vector.shape_cast %42 : vector<16xf32> to vector<16x1xf32>
    %cst_22 = arith.constant 3.200000e+01 : f32
    %44 = vector.broadcast %cst_22 : f32 to vector<16x1xf32>
    %45 = arith.divf %43, %44 : vector<16x1xf32>
    %46 = vector.broadcast %38 : vector<16x1xf32> to vector<16x32xf32>
    %47 = arith.subf %34, %46 : vector<16x32xf32>
    %cst_23 = arith.constant 9.99999974E-6 : f32
    %48 = vector.broadcast %cst_23 : f32 to vector<16x1xf32>
    %49 = arith.addf %45, %48 : vector<16x1xf32>
    %50 = math.rsqrt %49 : vector<16x1xf32>
    %51 = vector.broadcast %50 : vector<16x1xf32> to vector<16x32xf32>
    %52 = arith.mulf %47, %51 : vector<16x32xf32>
    %53 = vector.broadcast %1 : vector<1x32xf32> to vector<16x32xf32>
    %54 = arith.mulf %52, %53 : vector<16x32xf32>
    %55 = vector.broadcast %2 : vector<1x32xf32> to vector<16x32xf32>
    %56 = arith.addf %54, %55 : vector<16x32xf32>
    %c0_24 = arith.constant 0 : index
    %c0_25 = arith.constant 0 : index
    %c0_26 = arith.constant 0 : index
    %57 = vector.load %arg4[%c0_24, %c0_25, %c0_26] : memref<2x16x32xf32, #tpu.memory_space<vmem>>, vector<1x16x32xf32>
    %58 = vector.shape_cast %57 : vector<1x16x32xf32> to vector<16x32xf32>
    %59 = vector.shape_cast %56 : vector<16x32xf32> to vector<1x16x32xf32>
    tpu.vector_store %arg4[%c0_24, %c0_25, %c0_26], %59 {strides = array<i32>} : memref<2x16x32xf32, #tpu.memory_space<vmem>>, vector<1x16x32xf32>,
    %c1_27 = arith.constant 1 : index
    %c0_28 = arith.constant 0 : index
    %c0_29 = arith.constant 0 : index
    %60 = vector.load %arg1[%c1_27, %c0_28, %c0_29] : memref<2x16x32xf32, #tpu.memory_space<vmem>>, vector<1x16x32xf32>
    %61 = vector.shape_cast %60 : vector<1x16x32xf32> to vector<16x32xf32>
    %c1_i32_30 = arith.constant 1 : i32
    %62 = tpu.dynamic_rotate %61 by %c1_i32_30 dim 0 : vector<16x32xf32>, i32 -> vector<16x32xf32>
    %63 = vector.broadcast %7 : vector<16x1xf32> to vector<16x32xf32>
    %64 = arith.mulf %62, %63 : vector<16x32xf32>
    %c0_31 = arith.constant 0 : index
    %c0_32 = arith.constant 0 : index
    %c0_33 = arith.constant 0 : index
    %65 = vector.load %arg2[%c0_31, %c0_32, %c0_33] : memref<3x32x32xf32, #tpu.memory_space<vmem>>, vector<1x32x32xf32>
    %66 = vector.shape_cast %65 : vector<1x32x32xf32> to vector<32x32xf32>
    %cst_34 = arith.constant dense<0.000000e+00> : vector<16x32xf32>
    %67 = tpu.matmul %64, %66, %cst_34 {dimension_numbers = #tpu.dot_dimension_numbers<[1], [0], [0], [1], [0, 0, 1, 1], [], []>} : vector<16x32xf32>, vector<32x32xf32>, vector<16x32xf32> -> vector<16x32xf32>
    %68 = vector.broadcast %0 : vector<1x32xf32> to vector<16x32xf32>
    %69 = arith.addf %68, %67 : vector<16x32xf32>
    %c1_35 = arith.constant 1 : index
    %c0_36 = arith.constant 0 : index
    %c0_37 = arith.constant 0 : index
    %70 = vector.load %arg2[%c1_35, %c0_36, %c0_37] : memref<3x32x32xf32, #tpu.memory_space<vmem>>, vector<1x32x32xf32>
    %71 = vector.shape_cast %70 : vector<1x32x32xf32> to vector<32x32xf32>
    %cst_38 = arith.constant dense<0.000000e+00> : vector<16x32xf32>
    %72 = tpu.matmul %61, %71, %cst_38 {dimension_numbers = #tpu.dot_dimension_numbers<[1], [0], [0], [1], [0, 0, 1, 1], [], []>} : vector<16x32xf32>, vector<32x32xf32>, vector<16x32xf32> -> vector<16x32xf32>
    %73 = arith.addf %69, %72 : vector<16x32xf32>
    %c15_i32_39 = arith.constant 15 : i32
    %74 = tpu.dynamic_rotate %61 by %c15_i32_39 dim 0 : vector<16x32xf32>, i32 -> vector<16x32xf32>
    %75 = vector.broadcast %11 : vector<16x1xf32> to vector<16x32xf32>
    %76 = arith.mulf %74, %75 : vector<16x32xf32>
    %c2_40 = arith.constant 2 : index
    %c0_41 = arith.constant 0 : index
    %c0_42 = arith.constant 0 : index
    %77 = vector.load %arg2[%c2_40, %c0_41, %c0_42] : memref<3x32x32xf32, #tpu.memory_space<vmem>>, vector<1x32x32xf32>
    %78 = vector.shape_cast %77 : vector<1x32x32xf32> to vector<32x32xf32>
    %cst_43 = arith.constant dense<0.000000e+00> : vector<16x32xf32>
    %79 = tpu.matmul %76, %78, %cst_43 {dimension_numbers = #tpu.dot_dimension_numbers<[1], [0], [0], [1], [0, 0, 1, 1], [], []>} : vector<16x32xf32>, vector<32x32xf32>, vector<16x32xf32> -> vector<16x32xf32>
    %80 = arith.addf %73, %79 : vector<16x32xf32>
    %cst_44 = arith.constant 0.000000e+00 : f32
    %81 = vector.broadcast %cst_44 : f32 to vector<16x32xf32>
    %82 = arith.maximumf %80, %81 : vector<16x32xf32>
    %cst_45 = arith.constant dense<0.000000e+00> : vector<16xf32>
    %83 = vector.multi_reduction <add>, %82, %cst_45 [1] : vector<16x32xf32> to vector<16xf32>
    %84 = vector.shape_cast %83 : vector<16xf32> to vector<16x1xf32>
    %cst_46 = arith.constant 3.200000e+01 : f32
    %85 = vector.broadcast %cst_46 : f32 to vector<16x1xf32>
    %86 = arith.divf %84, %85 : vector<16x1xf32>
    %87 = vector.broadcast %86 : vector<16x1xf32> to vector<16x32xf32>
    %88 = arith.subf %82, %87 : vector<16x32xf32>
    %89 = arith.mulf %88, %88 : vector<16x32xf32>
    %cst_47 = arith.constant dense<0.000000e+00> : vector<16xf32>
    %90 = vector.multi_reduction <add>, %89, %cst_47 [1] : vector<16x32xf32> to vector<16xf32>
    %91 = vector.shape_cast %90 : vector<16xf32> to vector<16x1xf32>
    %cst_48 = arith.constant 3.200000e+01 : f32
    %92 = vector.broadcast %cst_48 : f32 to vector<16x1xf32>
    %93 = arith.divf %91, %92 : vector<16x1xf32>
    %94 = vector.broadcast %86 : vector<16x1xf32> to vector<16x32xf32>
    %95 = arith.subf %82, %94 : vector<16x32xf32>
    %cst_49 = arith.constant 9.99999974E-6 : f32
    %96 = vector.broadcast %cst_49 : f32 to vector<16x1xf32>
    %97 = arith.addf %93, %96 : vector<16x1xf32>
    %98 = math.rsqrt %97 : vector<16x1xf32>
    %99 = vector.broadcast %98 : vector<16x1xf32> to vector<16x32xf32>
    %100 = arith.mulf %95, %99 : vector<16x32xf32>
    %101 = vector.broadcast %1 : vector<1x32xf32> to vector<16x32xf32>
    %102 = arith.mulf %100, %101 : vector<16x32xf32>
    %103 = vector.broadcast %2 : vector<1x32xf32> to vector<16x32xf32>
    %104 = arith.addf %102, %103 : vector<16x32xf32>
    %c1_50 = arith.constant 1 : index
    %c0_51 = arith.constant 0 : index
    %c0_52 = arith.constant 0 : index
    %105 = vector.load %arg4[%c1_50, %c0_51, %c0_52] : memref<2x16x32xf32, #tpu.memory_space<vmem>>, vector<1x16x32xf32>
    %106 = vector.shape_cast %105 : vector<1x16x32xf32> to vector<16x32xf32>
    %107 = vector.shape_cast %104 : vector<16x32xf32> to vector<1x16x32xf32>
    tpu.vector_store %arg4[%c1_50, %c0_51, %c0_52], %107 {strides = array<i32>} : memref<2x16x32xf32, #tpu.memory_space<vmem>>, vector<1x16x32xf32>,
    return
  }
  func.func @transform_0(%arg0: i32) -> (i32, i32, i32) {
    %c0_i32 = arith.constant 0 : i32
    %c0_i32_0 = arith.constant 0 : i32
    %c0_i32_1 = arith.constant 0 : i32
    return %arg0, %c0_i32, %c0_i32_0 : i32, i32, i32
  }
  func.func @transform_1(%arg0: i32) -> (i32, i32, i32) {
    %c0_i32 = arith.constant 0 : i32
    %c0_i32_0 = arith.constant 0 : i32
    %c0_i32_1 = arith.constant 0 : i32
    %c0_i32_2 = arith.constant 0 : i32
    return %c0_i32, %c0_i32_0, %c0_i32_1 : i32, i32, i32
  }
  func.func @transform_2(%arg0: i32) -> (i32, i32) {
    %c0_i32 = arith.constant 0 : i32
    %c0_i32_0 = arith.constant 0 : i32
    %c0_i32_1 = arith.constant 0 : i32
    return %c0_i32, %c0_i32_0 : i32, i32
  }
  func.func @transform_3(%arg0: i32) -> (i32, i32, i32) {
    %c0_i32 = arith.constant 0 : i32
    %c0_i32_0 = arith.constant 0 : i32
    %c0_i32_1 = arith.constant 0 : i32
    return %arg0, %c0_i32, %c0_i32_0 : i32, i32, i32
  }
}

</mosaic_0001>

<llo_original>
// kernel: tpu_custom_call.1
$region0: #{tpu_custom_call.1}
  #allocation0 [shape = 'u32[]', space=smem, size = 0x4, offset = 0x4, fixed_abs, tag = 'smem constant byte address 0x4 - core index']
  #allocation1 [shape = 'u32[144,128]{1,0:T(1,128)}', space=vmem, size = 0x12000, scoped, tag = 'internal scratch']
  %s0 = inlined_call_operand.hbm [shape: f32[2,16,32], index: 0, kind: input, shape index: {}]
  %s1 = inlined_call_operand.hbm [shape: f32[3,32,32], index: 1, kind: input, shape index: {}]
  %s2 = inlined_call_operand.vmem [shape: f32[3,32], index: 2, kind: input, shape index: {}]
  %s3 = inlined_call_operand.hbm [shape: f32[2,16,32], index: 3, kind: output, shape index: {}]
  %s4 = sld [smem:[#allocation0]]
  $region30: #{tpu_custom_call.1} parent=0
    _
  %s6 = ssub.s32 1, %s4
  %s7 = scalar_select 0, %s6, %s4
  $region1: #{tpu_custom_call.1} parent=0
    #allocation2 [shape = 'u8[16384]{0}', space=vmem, size = 0x4000, scoped, tag = 'input window, operand 0, single buffered']
    #allocation3 [shape = 's32[1]{0}', space=sflag, size = 0x4, scoped, tag = 'scoped memory for tpu_custom_call.1']
    #allocation4 [shape = 's32[1]{0}', space=sflag, size = 0x4, scoped, tag = 'scoped memory for tpu_custom_call.1']
    #allocation5 [shape = 'u8[49152]{0}', space=vmem, size = 0xc000, scoped, tag = 'input window, operand 1, single buffered']
    #allocation6 [shape = 's32[1]{0}', space=sflag, size = 0x4, scoped, tag = 'scoped memory for tpu_custom_call.1']
    #allocation7 [shape = 'u8[16384]{0}', space=vmem, size = 0x4000, scoped, tag = 'output window, operand 0, single buffered']
    %8 = vsyncpa [#allocation3], 0
    %9 = vsyncpa [#allocation6], 0
    %10 = vsyncpa [#allocation4], 0
    // Predicated region
    $region2: #{tpu_custom_call.1} parent=1 // pred_check
      _
    $region3: #{tpu_custom_call.1} parent=1 // pred_check_branch
      %12 = sbr.rel (0) target = $region5
    $region4: #{tpu_custom_call.1} parent=1 // pred_region
      %s14 = ssub.s32 512, 512
      %15 = vsyncadd [#allocation3], %s14
      %s16 = sshll.u32 [#allocation2], 4
      %s17 = int_to_ptr.vmem [resolvable:$true] %s16
      %22 = dma.hbm_to_vmem [thread:$0]  %s0, 512, %s17, [#allocation3], 128, 128, 8
    $region5: #{tpu_custom_call.1} parent=1 // pred_fallthru
      _
    // Predicated region
    $region6: #{tpu_custom_call.1} parent=1 // pred_check
      _
    $region7: #{tpu_custom_call.1} parent=1 // pred_check_branch
      %24 = sbr.rel (0) target = $region9
    $region8: #{tpu_custom_call.1} parent=1 // pred_region
      %s26 = ssub.s32 1536, 1536
      %27 = vsyncadd [#allocation6], %s26
      %s28 = sshll.u32 [#allocation5], 4
      %s29 = int_to_ptr.vmem [resolvable:$true] %s28
      %34 = dma.hbm_to_vmem [thread:$0]  %s1, 1536, %s29, [#allocation6], 128, 128, 8
    $region9: #{tpu_custom_call.1} parent=1 // pred_fallthru
      _
    // Predicated region
    $region10: #{tpu_custom_call.1} parent=1 // pred_check
      _
    $region11: #{tpu_custom_call.1} parent=1 // pred_check_branch
      %36 = sbr.rel (0) target = $region13
    $region12: #{tpu_custom_call.1} parent=1 // pred_region
      _
    $region13: #{tpu_custom_call.1} parent=1 // pred_fallthru
      _
    // Predicated region
    $region14: #{tpu_custom_call.1} parent=1 // pred_check
      _
    $region15: #{tpu_custom_call.1} parent=1 // pred_check_branch
      %38 = sbr.rel (0) target = $region17
    $region16: #{tpu_custom_call.1} parent=1 // pred_region
      %39 = dma.done [#allocation3], 512
    $region17: #{tpu_custom_call.1} parent=1 // pred_fallthru
      _
    // Predicated region
    $region18: #{tpu_custom_call.1} parent=1 // pred_check
      _
    $region19: #{tpu_custom_call.1} parent=1 // pred_check_branch
      %41 = sbr.rel (0) target = $region21
    $region20: #{tpu_custom_call.1} parent=1 // pred_region
      %42 = dma.done [#allocation6], 1536
    $region21: #{tpu_custom_call.1} parent=1 // pred_fallthru
      _
    %v43 = vld [vmem:[%s2] sm:$0x1]
    %v44 = vld [vmem:[%s2 + $0x1] sm:$0x1]
    %v45 = vld [vmem:[%s2 + $0x2] sm:$0x1]
    %v46 = vlaneseq
    %v47 = vshrl.u32 %v46, 7
    %v48 = vadd.s32 %v47, 8
    %vm49 = vcmp.ge.s32.totalorder %v47, 1
    %vm50 = vcmp.ge.s32.totalorder %v48, 1
    %v51 = vsel %vm49, 1, 0
    %v52 = vsel %vm50, 1, 0
    %v53 = vcvt.s32.f32 %v51
    %v54 = vcvt.s32.f32 %v52
    %vm55 = vcmp.le.s32.totalorder %v47, 14
    %vm56 = vcmp.le.s32.totalorder %v48, 14
    %v57 = vsel %vm55, 1, 0
    %v58 = vsel %vm56, 1, 0
    %v59 = vcvt.s32.f32 %v57
    %v60 = vcvt.s32.f32 %v58
    %v61 = vld [vmem:[#allocation2] sm:$0xff]
    %v62 = vld [vmem:[#allocation2 + $0x8] sm:$0xff]
    %v63 = vrot.slane %v61, 7
    %v64 = vrot.slane %v62, 7
    %vm65 = vcmp.lt.s32.totalorder %v47, 1
    %v66 = vsel %vm65, %v63, %v64
    %v67 = vsel %vm65, %v64, %v63
    %v68 = vmul.f32 %v67, %v53
    %v69 = vmul.f32 %v66, %v54
    %v70 = vld [vmem:[#allocation5] sm:$0xff]
    %v71 = vld [vmem:[#allocation5 + $0x8] sm:$0xff]
    %v72 = vld [vmem:[#allocation5 + $0x10] sm:$0xff]
    %v73 = vld [vmem:[#allocation5 + $0x18] sm:$0xff]
    %vm74 = vcmask 261120
    %v76 = vsel %vm74, %v68, 0
    %v79 = vsel %vm74, %v69, 0
    %81 = vmatprep.subr.mxu0 0.0
    %82 = vmatpush1.msra.mxu0 %v70
    %83 = vmatprep.subr.mxu0 0.0
    %84 = vmatpush1.msra.mxu0 %v71
    %85 = vmatprep.subr.mxu0 0.0
    %86 = vmatpush1.msra.mxu0 %v72
    %87 = vmatprep.subr.mxu0 0.0
    %88 = vmatpush1.msra.mxu0 %v73
    %89 = vmatprep.subr.mxu0 0.0
    %90 = vmatpush1.msra.mxu0 0.0
    %91 = vmatprep.subr.mxu0 0.0
    %92 = vmatpush1.msra.mxu0 0.0
    %93 = vmatprep.subr.mxu0 0.0
    %94 = vmatpush1.msra.mxu0 0.0
    %95 = vmatprep.subr.mxu0 0.0
    %96 = vmatpush1.msra.mxu0 0.0
    %97 = vmatprep.subr.mxu0 0.0
    %98 = vmatpush1.msra.mxu0 0.0
    %99 = vmatprep.subr.mxu0 0.0
    %100 = vmatpush1.msra.mxu0 0.0
    %101 = vmatprep.subr.mxu0 0.0
    %102 = vmatpush1.msra.mxu0 0.0
    %103 = vmatprep.subr.mxu0 0.0
    %104 = vmatpush1.msra.mxu0 0.0
    %105 = vmatprep.subr.mxu0 0.0
    %106 = vmatpush1.msra.mxu0 0.0
    %107 = vmatprep.subr.mxu0 0.0
    %108 = vmatpush1.msra.mxu0 0.0
    %109 = vmatprep.subr.mxu0 0.0
    %110 = vmatpush1.msra.mxu0 0.0
    %111 = vmatprep.subr.mxu0 0.0
    %112 = vmatpush1.msra.mxu0 0.0
    %113 = vmatprep.subr.mxu0 0.0
    %114 = vmatpush1.msra.mxu0 0.0
    %115 = vmatprep.subr.mxu0 0.0
    %116 = vmatpush1.msra.mxu0 0.0
    %117 = vmatprep.subr.mxu0 0.0
    %118 = vmatpush1.msra.mxu0 0.0
    %119 = vmatprep.subr.mxu0 0.0
    %120 = vmatpush1.msra.mxu0 0.0
    %121 = vmatprep.subr.mxu0 0.0
    %122 = vmatpush1.msra.mxu0 0.0
    %123 = vmatprep.subr.mxu0 0.0
    %124 = vmatpush1.msra.mxu0 0.0
    %125 = vmatprep.subr.mxu0 0.0
    %126 = vmatpush1.msra.mxu0 0.0
    %127 = vmatprep.subr.mxu0 0.0
    %128 = vmatpush1.msra.mxu0 0.0
    %129 = vmatprep.subr.mxu0 0.0
    %130 = vmatpush1.msra.mxu0 0.0
    %131 = vmatprep.subr.mxu0 0.0
    %132 = vmatpush1.msra.mxu0 0.0
    %133 = vmatprep.subr.mxu0 0.0
    %134 = vmatpush1.msra.mxu0 0.0
    %135 = vmatprep.subr.mxu0 0.0
    %136 = vmatpush1.msra.mxu0 0.0
    %137 = vmatprep.subr.mxu0 0.0
    %138 = vmatpush1.msra.mxu0 0.0
    %139 = vmatprep.subr.mxu0 0.0
    %140 = vmatpush1.msra.mxu0 0.0
    %141 = vmatprep.subr.mxu0 0.0
    %142 = vmatpush1.msra.mxu0 0.0
    %143 = vmatprep.subr.mxu0 0.0
    %144 = vmatpush1.msra.mxu0 0.0
    %145 = vmatprep.mubr.f32.mxu0 0.0
    %146 = vmatmul.mubr.f32.gmra.mrb[0].mxu0 %v76
    %v147 = vpop.f32.mrb[0].mxu0
    %v148 = vadd.f32 0.0, %v147
    %v149 = vpop.f32.mrb[0].mxu0
    %150 = vmatprep.mubr.f32.mxu0 0.0
    %151 = vmatmul.mubr.f32.gmra.mrb[0].mxu0 %v79
    %v152 = vpop.f32.mrb[0].mxu0
    %v153 = vadd.f32 0.0, %v152
    %v154 = vpop.f32.mrb[0].mxu0
    %155 = vdwg.mxu0
    %v156 = vlaneseq
    %v157 = vshrl.u32 %v156, 7
    %v158 = vsub.s32 0, %v157
    %v159 = vrot.slane %v43, %v158
    %v160 = vadd.f32 %v159, %v148
    %v161 = vadd.f32 %v159, %v153
    %s162 = scalar_lea.vmem [#allocation5], 32
    %v163 = vld [vmem:[%s162] sm:$0xff]
    %v164 = vld [vmem:[%s162 + $0x8] sm:$0xff]
    %v165 = vld [vmem:[%s162 + $0x10] sm:$0xff]
    %v166 = vld [vmem:[%s162 + $0x18] sm:$0xff]
    %v168 = vsel %vm74, %v61, 0
    %v171 = vsel %vm74, %v62, 0
    %173 = vmatprep.subr.mxu0 0.0
    %174 = vmatpush1.msra.mxu0 %v163
    %175 = vmatprep.subr.mxu0 0.0
    %176 = vmatpush1.msra.mxu0 %v164
    %177 = vmatprep.subr.mxu0 0.0
    %178 = vmatpush1.msra.mxu0 %v165
    %179 = vmatprep.subr.mxu0 0.0
    %180 = vmatpush1.msra.mxu0 %v166
    %181 = vmatprep.subr.mxu0 0.0
    %182 = vmatpush1.msra.mxu0 0.0
    %183 = vmatprep.subr.mxu0 0.0
    %184 = vmatpush1.msra.mxu0 0.0
    %185 = vmatprep.subr.mxu0 0.0
    %186 = vmatpush1.msra.mxu0 0.0
    %187 = vmatprep.subr.mxu0 0.0
    %188 = vmatpush1.msra.mxu0 0.0
    %189 = vmatprep.subr.mxu0 0.0
    %190 = vmatpush1.msra.mxu0 0.0
    %191 = vmatprep.subr.mxu0 0.0
    %192 = vmatpush1.msra.mxu0 0.0
    %193 = vmatprep.subr.mxu0 0.0
    %194 = vmatpush1.msra.mxu0 0.0
    %195 = vmatprep.subr.mxu0 0.0
    %196 = vmatpush1.msra.mxu0 0.0
    %197 = vmatprep.subr.mxu0 0.0
    %198 = vmatpush1.msra.mxu0 0.0
    %199 = vmatprep.subr.mxu0 0.0
    %200 = vmatpush1.msra.mxu0 0.0
    %201 = vmatprep.subr.mxu0 0.0
    %202 = vmatpush1.msra.mxu0 0.0
    %203 = vmatprep.subr.mxu0 0.0
    %204 = vmatpush1.msra.mxu0 0.0
    %205 = vmatprep.subr.mxu0 0.0
    %206 = vmatpush1.msra.mxu0 0.0
    %207 = vmatprep.subr.mxu0 0.0
    %208 = vmatpush1.msra.mxu0 0.0
    %209 = vmatprep.subr.mxu0 0.0
    %210 = vmatpush1.msra.mxu0 0.0
    %211 = vmatprep.subr.mxu0 0.0
    %212 = vmatpush1.msra.mxu0 0.0
    %213 = vmatprep.subr.mxu0 0.0
    %214 = vmatpush1.msra.mxu0 0.0
    %215 = vmatprep.subr.mxu0 0.0
    %216 = vmatpush1.msra.mxu0 0.0
    %217 = vmatprep.subr.mxu0 0.0
    %218 = vmatpush1.msra.mxu0 0.0
    %219 = vmatprep.subr.mxu0 0.0
    %220 = vmatpush1.msra.mxu0 0.0
    %221 = vmatprep.subr.mxu0 0.0
    %222 = vmatpush1.msra.mxu0 0.0
    %223 = vmatprep.subr.mxu0 0.0
    %224 = vmatpush1.msra.mxu0 0.0
    %225 = vmatprep.subr.mxu0 0.0
    %226 = vmatpush1.msra.mxu0 0.0
    %227 = vmatprep.subr.mxu0 0.0
    %228 = vmatpush1.msra.mxu0 0.0
    %229 = vmatprep.subr.mxu0 0.0
    %230 = vmatpush1.msra.mxu0 0.0
    %231 = vmatprep.subr.mxu0 0.0
    %232 = vmatpush1.msra.mxu0 0.0
    %233 = vmatprep.subr.mxu0 0.0
    %234 = vmatpush1.msra.mxu0 0.0
    %235 = vmatprep.subr.mxu0 0.0
    %236 = vmatpush1.msra.mxu0 0.0
    %237 = vmatprep.mubr.f32.mxu0 0.0
    %238 = vmatmul.mubr.f32.gmra.mrb[0].mxu0 %v168
    %v239 = vpop.f32.mrb[0].mxu0
    %v240 = vadd.f32 0.0, %v239
    %v241 = vpop.f32.mrb[0].mxu0
    %242 = vmatprep.mubr.f32.mxu0 0.0
    %243 = vmatmul.mubr.f32.gmra.mrb[0].mxu0 %v171
    %v244 = vpop.f32.mrb[0].mxu0
    %v245 = vadd.f32 0.0, %v244
    %v246 = vpop.f32.mrb[0].mxu0
    %247 = vdwg.mxu0
    %v248 = vadd.f32 %v160, %v240
    %v249 = vadd.f32 %v161, %v245
    %v250 = vrot.slane %v61, 1
    %v251 = vrot.slane %v62, 1
    %vm252 = vcmp.lt.s32.totalorder %v47, 7
    %v253 = vsel %vm252, %v250, %v251
    %v254 = vsel %vm252, %v251, %v250
    %v255 = vmul.f32 %v253, %v59
    %v256 = vmul.f32 %v254, %v60
    %s257 = scalar_lea.vmem [#allocation5], 64
    %v258 = vld [vmem:[%s257] sm:$0xff]
    %v259 = vld [vmem:[%s257 + $0x8] sm:$0xff]
    %v260 = vld [vmem:[%s257 + $0x10] sm:$0xff]
    %v261 = vld [vmem:[%s257 + $0x18] sm:$0xff]
    %v263 = vsel %vm74, %v255, 0
    %v266 = vsel %vm74, %v256, 0
    %268 = vmatprep.subr.mxu0 0.0
    %269 = vmatpush1.msra.mxu0 %v258
    %270 = vmatprep.subr.mxu0 0.0
    %271 = vmatpush1.msra.mxu0 %v259
    %272 = vmatprep.subr.mxu0 0.0
    %273 = vmatpush1.msra.mxu0 %v260
    %274 = vmatprep.subr.mxu0 0.0
    %275 = vmatpush1.msra.mxu0 %v261
    %276 = vmatprep.subr.mxu0 0.0
    %277 = vmatpush1.msra.mxu0 0.0
    %278 = vmatprep.subr.mxu0 0.0
    %279 = vmatpush1.msra.mxu0 0.0
    %280 = vmatprep.subr.mxu0 0.0
    %281 = vmatpush1.msra.mxu0 0.0
    %282 = vmatprep.subr.mxu0 0.0
    %283 = vmatpush1.msra.mxu0 0.0
    %284 = vmatprep.subr.mxu0 0.0
    %285 = vmatpush1.msra.mxu0 0.0
    %286 = vmatprep.subr.mxu0 0.0
    %287 = vmatpush1.msra.mxu0 0.0
    %288 = vmatprep.subr.mxu0 0.0
    %289 = vmatpush1.msra.mxu0 0.0
    %290 = vmatprep.subr.mxu0 0.0
    %291 = vmatpush1.msra.mxu0 0.0
    %292 = vmatprep.subr.mxu0 0.0
    %293 = vmatpush1.msra.mxu0 0.0
    %294 = vmatprep.subr.mxu0 0.0
    %295 = vmatpush1.msra.mxu0 0.0
    %296 = vmatprep.subr.mxu0 0.0
    %297 = vmatpush1.msra.mxu0 0.0
    %298 = vmatprep.subr.mxu0 0.0
    %299 = vmatpush1.msra.mxu0 0.0
    %300 = vmatprep.subr.mxu0 0.0
    %301 = vmatpush1.msra.mxu0 0.0
    %302 = vmatprep.subr.mxu0 0.0
    %303 = vmatpush1.msra.mxu0 0.0
    %304 = vmatprep.subr.mxu0 0.0
    %305 = vmatpush1.msra.mxu0 0.0
    %306 = vmatprep.subr.mxu0 0.0
    %307 = vmatpush1.msra.mxu0 0.0
    %308 = vmatprep.subr.mxu0 0.0
    %309 = vmatpush1.msra.mxu0 0.0
    %310 = vmatprep.subr.mxu0 0.0
    %311 = vmatpush1.msra.mxu0 0.0
    %312 = vmatprep.subr.mxu0 0.0
    %313 = vmatpush1.msra.mxu0 0.0
    %314 = vmatprep.subr.mxu0 0.0
    %315 = vmatpush1.msra.mxu0 0.0
    %316 = vmatprep.subr.mxu0 0.0
    %317 = vmatpush1.msra.mxu0 0.0
    %318 = vmatprep.subr.mxu0 0.0
    %319 = vmatpush1.msra.mxu0 0.0
    %320 = vmatprep.subr.mxu0 0.0
    %321 = vmatpush1.msra.mxu0 0.0
    %322 = vmatprep.subr.mxu0 0.0
    %323 = vmatpush1.msra.mxu0 0.0
    %324 = vmatprep.subr.mxu0 0.0
    %325 = vmatpush1.msra.mxu0 0.0
    %326 = vmatprep.subr.mxu0 0.0
    %327 = vmatpush1.msra.mxu0 0.0
    %328 = vmatprep.subr.mxu0 0.0
    %329 = vmatpush1.msra.mxu0 0.0
    %330 = vmatprep.subr.mxu0 0.0
    %331 = vmatpush1.msra.mxu0 0.0
    %332 = vmatprep.mubr.f32.mxu0 0.0
    %333 = vmatmul.mubr.f32.gmra.mrb[0].mxu0 %v263
    %v334 = vpop.f32.mrb[0].mxu0
    %v335 = vadd.f32 0.0, %v334
    %v336 = vpop.f32.mrb[0].mxu0
    %337 = vmatprep.mubr.f32.mxu0 0.0
    %338 = vmatmul.mubr.f32.gmra.mrb[0].mxu0 %v266
    %v339 = vpop.f32.mrb[0].mxu0
    %v340 = vadd.f32 0.0, %v339
    %v341 = vpop.f32.mrb[0].mxu0
    %342 = vdwg.mxu0
    %v343 = vadd.f32 %v248, %v335
    %v344 = vadd.f32 %v249, %v340
    %v345 = vmax.f32 %v343, 0.0
    %v346 = vmax.f32 %v344, 0.0
    %v347 = vsel %vm74, %v345, 0.0
    %348 = vadd.xlane.f32.xlu0 %v347
    %v349 = vpop.xlane.xlu0 %348
    %v350 = vsel %vm74, %v346, 0.0
    %351 = vadd.xlane.f32.xlu0 %v350
    %v352 = vpop.xlane.xlu0 %351
    %v353 = vrcp.pop 32.0
    %v354 = vmul.f32 %v349, %v353
    %v355 = vmul.f32 %v352, %v353
    %v356 = vsub.f32 %v345, %v354
    %v357 = vsub.f32 %v346, %v355
    %v358 = vmul.f32 %v356, %v356
    %v359 = vmul.f32 %v357, %v357
    %v360 = vsel %vm74, %v358, 0.0
    %361 = vadd.xlane.f32.xlu0 %v360
    %v362 = vpop.xlane.xlu0 %361
    %v363 = vsel %vm74, %v359, 0.0
    %364 = vadd.xlane.f32.xlu0 %v363
    %v365 = vpop.xlane.xlu0 %364
    %v366 = vmul.f32 %v362, %v353
    %v367 = vmul.f32 %v365, %v353
    %v368 = vadd.f32 %v366, 1e-05
    %v369 = vadd.f32 %v367, 1e-05
    %v370 = vrsqrt.pop %v368
    %v371 = vrsqrt.pop %v369
    %v372 = vmul.f32 %v356, %v370
    %v373 = vmul.f32 %v357, %v371
    %v374 = vlaneseq
    %v375 = vshrl.u32 %v374, 7
    %v376 = vsub.s32 0, %v375
    %v377 = vrot.slane %v44, %v376
    %v378 = vmul.f32 %v372, %v377
    %v379 = vmul.f32 %v373, %v377
    %v380 = vlaneseq
    %v381 = vshrl.u32 %v380, 7
    %v382 = vsub.s32 0, %v381
    %v383 = vrot.slane %v45, %v382
    %v384 = vadd.f32 %v378, %v383
    %v385 = vadd.f32 %v379, %v383
    %386 = vst.msk [vmem:[#allocation7] sm:$0xff] %vm74, %v384
    %387 = vst.msk [vmem:[#allocation7 + $0x8] sm:$0xff] %vm74, %v385
    %s388 = scalar_lea.vmem [#allocation2], 16
    %v389 = vld [vmem:[%s388] sm:$0xff]
    %v390 = vld [vmem:[%s388 + $0x8] sm:$0xff]
    %v391 = vrot.slane %v389, 7
    %v392 = vrot.slane %v390, 7
    %v393 = vsel %vm65, %v391, %v392
    %v394 = vsel %vm65, %v392, %v391
    %v395 = vmul.f32 %v394, %v53
    %v396 = vmul.f32 %v393, %v54
    %v397 = vld [vmem:[#allocation5] sm:$0xff]
    %v398 = vld [vmem:[#allocation5 + $0x8] sm:$0xff]
    %v399 = vld [vmem:[#allocation5 + $0x10] sm:$0xff]
    %v400 = vld [vmem:[#allocation5 + $0x18] sm:$0xff]
    %v402 = vsel %vm74, %v395, 0
    %v405 = vsel %vm74, %v396, 0
    %407 = vmatprep.subr.mxu0 0.0
    %408 = vmatpush1.msra.mxu0 %v397
    %409 = vmatprep.subr.mxu0 0.0
    %410 = vmatpush1.msra.mxu0 %v398
    %411 = vmatprep.subr.mxu0 0.0
    %412 = vmatpush1.msra.mxu0 %v399
    %413 = vmatprep.subr.mxu0 0.0
    %414 = vmatpush1.msra.mxu0 %v400
    %415 = vmatprep.subr.mxu0 0.0
    %416 = vmatpush1.msra.mxu0 0.0
    %417 = vmatprep.subr.mxu0 0.0
    %418 = vmatpush1.msra.mxu0 0.0
    %419 = vmatprep.subr.mxu0 0.0
    %420 = vmatpush1.msra.mxu0 0.0
    %421 = vmatprep.subr.mxu0 0.0
    %422 = vmatpush1.msra.mxu0 0.0
    %423 = vmatprep.subr.mxu0 0.0
    %424 = vmatpush1.msra.mxu0 0.0
    %425 = vmatprep.subr.mxu0 0.0
    %426 = vmatpush1.msra.mxu0 0.0
    %427 = vmatprep.subr.mxu0 0.0
    %428 = vmatpush1.msra.mxu0 0.0
    %429 = vmatprep.subr.mxu0 0.0
    %430 = vmatpush1.msra.mxu0 0.0
    %431 = vmatprep.subr.mxu0 0.0
    %432 = vmatpush1.msra.mxu0 0.0
    %433 = vmatprep.subr.mxu0 0.0
    %434 = vmatpush1.msra.mxu0 0.0
    %435 = vmatprep.subr.mxu0 0.0
    %436 = vmatpush1.msra.mxu0 0.0
    %437 = vmatprep.subr.mxu0 0.0
    %438 = vmatpush1.msra.mxu0 0.0
    %439 = vmatprep.subr.mxu0 0.0
    %440 = vmatpush1.msra.mxu0 0.0
    %441 = vmatprep.subr.mxu0 0.0
    %442 = vmatpush1.msra.mxu0 0.0
    %443 = vmatprep.subr.mxu0 0.0
    %444 = vmatpush1.msra.mxu0 0.0
    %445 = vmatprep.subr.mxu0 0.0
    %446 = vmatpush1.msra.mxu0 0.0
    %447 = vmatprep.subr.mxu0 0.0
    %448 = vmatpush1.msra.mxu0 0.0
    %449 = vmatprep.subr.mxu0 0.0
    %450 = vmatpush1.msra.mxu0 0.0
    %451 = vmatprep.subr.mxu0 0.0
    %452 = vmatpush1.msra.mxu0 0.0
    %453 = vmatprep.subr.mxu0 0.0
    %454 = vmatpush1.msra.mxu0 0.0
    %455 = vmatprep.subr.mxu0 0.0
    %456 = vmatpush1.msra.mxu0 0.0
    %457 = vmatprep.subr.mxu0 0.0
    %458 = vmatpush1.msra.mxu0 0.0
    %459 = vmatprep.subr.mxu0 0.0
    %460 = vmatpush1.msra.mxu0 0.0
    %461 = vmatprep.subr.mxu0 0.0
    %462 = vmatpush1.msra.mxu0 0.0
    %463 = vmatprep.subr.mxu0 0.0
    %464 = vmatpush1.msra.mxu0 0.0
    %465 = vmatprep.subr.mxu0 0.0
    %466 = vmatpush1.msra.mxu0 0.0
    %467 = vmatprep.subr.mxu0 0.0
    %468 = vmatpush1.msra.mxu0 0.0
    %469 = vmatprep.subr.mxu0 0.0
    %470 = vmatpush1.msra.mxu0 0.0
    %471 = vmatprep.mubr.f32.mxu0 0.0
    %472 = vmatmul.mubr.f32.gmra.mrb[0].mxu0 %v402
    %v473 = vpop.f32.mrb[0].mxu0
    %v474 = vadd.f32 0.0, %v473
    %v475 = vpop.f32.mrb[0].mxu0
    %476 = vmatprep.mubr.f32.mxu0 0.0
    %477 = vmatmul.mubr.f32.gmra.mrb[0].mxu0 %v405
    %v478 = vpop.f32.mrb[0].mxu0
    %v479 = vadd.f32 0.0, %v478
    %v480 = vpop.f32.mrb[0].mxu0
    %481 = vdwg.mxu0
    %v482 = vadd.f32 %v159, %v474
    %v483 = vadd.f32 %v159, %v479
    %v484 = vld [vmem:[%s162] sm:$0xff]
    %v485 = vld [vmem:[%s162 + $0x8] sm:$0xff]
    %v486 = vld [vmem:[%s162 + $0x10] sm:$0xff]
    %v487 = vld [vmem:[%s162 + $0x18] sm:$0xff]
    %v489 = vsel %vm74, %v389, 0
    %v492 = vsel %vm74, %v390, 0
    %494 = vmatprep.subr.mxu0 0.0
    %495 = vmatpush1.msra.mxu0 %v484
    %496 = vmatprep.subr.mxu0 0.0
    %497 = vmatpush1.msra.mxu0 %v485
    %498 = vmatprep.subr.mxu0 0.0
    %499 = vmatpush1.msra.mxu0 %v486
    %500 = vmatprep.subr.mxu0 0.0
    %501 = vmatpush1.msra.mxu0 %v487
    %502 = vmatprep.subr.mxu0 0.0
    %503 = vmatpush1.msra.mxu0 0.0
    %504 = vmatprep.subr.mxu0 0.0
    %505 = vmatpush1.msra.mxu0 0.0
    %506 = vmatprep.subr.mxu0 0.0
    %507 = vmatpush1.msra.mxu0 0.0
    %508 = vmatprep.subr.mxu0 0.0
    %509 = vmatpush1.msra.mxu0 0.0
    %510 = vmatprep.subr.mxu0 0.0
    %511 = vmatpush1.msra.mxu0 0.0
    %512 = vmatprep.subr.mxu0 0.0
    %513 = vmatpush1.msra.mxu0 0.0
    %514 = vmatprep.subr.mxu0 0.0
    %515 = vmatpush1.msra.mxu0 0.0
    %516 = vmatprep.subr.mxu0 0.0
    %517 = vmatpush1.msra.mxu0 0.0
    %518 = vmatprep.subr.mxu0 0.0
    %519 = vmatpush1.msra.mxu0 0.0
    %520 = vmatprep.subr.mxu0 0.0
    %521 = vmatpush1.msra.mxu0 0.0
    %522 = vmatprep.subr.mxu0 0.0
    %523 = vmatpush1.msra.mxu0 0.0
    %524 = vmatprep.subr.mxu0 0.0
    %525 = vmatpush1.msra.mxu0 0.0
    %526 = vmatprep.subr.mxu0 0.0
    %527 = vmatpush1.msra.mxu0 0.0
    %528 = vmatprep.subr.mxu0 0.0
    %529 = vmatpush1.msra.mxu0 0.0
    %530 = vmatprep.subr.mxu0 0.0
    %531 = vmatpush1.msra.mxu0 0.0
    %532 = vmatprep.subr.mxu0 0.0
    %533 = vmatpush1.msra.mxu0 0.0
    %534 = vmatprep.subr.mxu0 0.0
    %535 = vmatpush1.msra.mxu0 0.0
    %536 = vmatprep.subr.mxu0 0.0
    %537 = vmatpush1.msra.mxu0 0.0
    %538 = vmatprep.subr.mxu0 0.0
    %539 = vmatpush1.msra.mxu0 0.0
    %540 = vmatprep.subr.mxu0 0.0
    %541 = vmatpush1.msra.mxu0 0.0
    %542 = vmatprep.subr.mxu0 0.0
    %543 = vmatpush1.msra.mxu0 0.0
    %544 = vmatprep.subr.mxu0 0.0
    %545 = vmatpush1.msra.mxu0 0.0
    %546 = vmatprep.subr.mxu0 0.0
    %547 = vmatpush1.msra.mxu0 0.0
    %548 = vmatprep.subr.mxu0 0.0
    %549 = vmatpush1.msra.mxu0 0.0
    %550 = vmatprep.subr.mxu0 0.0
    %551 = vmatpush1.msra.mxu0 0.0
    %552 = vmatprep.subr.mxu0 0.0
    %553 = vmatpush1.msra.mxu0 0.0
    %554 = vmatprep.subr.mxu0 0.0
    %555 = vmatpush1.msra.mxu0 0.0
    %556 = vmatprep.subr.mxu0 0.0
    %557 = vmatpush1.msra.mxu0 0.0
    %558 = vmatprep.mubr.f32.mxu0 0.0
    %559 = vmatmul.mubr.f32.gmra.mrb[0].mxu0 %v489
    %v560 = vpop.f32.mrb[0].mxu0
    %v561 = vadd.f32 0.0, %v560
    %v562 = vpop.f32.mrb[0].mxu0
    %563 = vmatprep.mubr.f32.mxu0 0.0
    %564 = vmatmul.mubr.f32.gmra.mrb[0].mxu0 %v492
    %v565 = vpop.f32.mrb[0].mxu0
    %v566 = vadd.f32 0.0, %v565
    %v567 = vpop.f32.mrb[0].mxu0
    %568 = vdwg.mxu0
    %v569 = vadd.f32 %v482, %v561
    %v570 = vadd.f32 %v483, %v566
    %v571 = vrot.slane %v389, 1
    %v572 = vrot.slane %v390, 1
    %v573 = vsel %vm252, %v571, %v572
    %v574 = vsel %vm252, %v572, %v571
    %v575 = vmul.f32 %v573, %v59
    %v576 = vmul.f32 %v574, %v60
    %v577 = vld [vmem:[%s257] sm:$0xff]
    %v578 = vld [vmem:[%s257 + $0x8] sm:$0xff]
    %v579 = vld [vmem:[%s257 + $0x10] sm:$0xff]
    %v580 = vld [vmem:[%s257 + $0x18] sm:$0xff]
    %v582 = vsel %vm74, %v575, 0
    %v585 = vsel %vm74, %v576, 0
    %587 = vmatprep.subr.mxu0 0.0
    %588 = vmatpush1.msra.mxu0 %v577
    %589 = vmatprep.subr.mxu0 0.0
    %590 = vmatpush1.msra.mxu0 %v578
    %591 = vmatprep.subr.mxu0 0.0
    %592 = vmatpush1.msra.mxu0 %v579
    %593 = vmatprep.subr.mxu0 0.0
    %594 = vmatpush1.msra.mxu0 %v580
    %595 = vmatprep.subr.mxu0 0.0
    %596 = vmatpush1.msra.mxu0 0.0
    %597 = vmatprep.subr.mxu0 0.0
    %598 = vmatpush1.msra.mxu0 0.0
    %599 = vmatprep.subr.mxu0 0.0
    %600 = vmatpush1.msra.mxu0 0.0
    %601 = vmatprep.subr.mxu0 0.0
    %602 = vmatpush1.msra.mxu0 0.0
    %603 = vmatprep.subr.mxu0 0.0
    %604 = vmatpush1.msra.mxu0 0.0
    %605 = vmatprep.subr.mxu0 0.0
    %606 = vmatpush1.msra.mxu0 0.0
    %607 = vmatprep.subr.mxu0 0.0
    %608 = vmatpush1.msra.mxu0 0.0
    %609 = vmatprep.subr.mxu0 0.0
    %610 = vmatpush1.msra.mxu0 0.0
    %611 = vmatprep.subr.mxu0 0.0
    %612 = vmatpush1.msra.mxu0 0.0
    %613 = vmatprep.subr.mxu0 0.0
    %614 = vmatpush1.msra.mxu0 0.0
    %615 = vmatprep.subr.mxu0 0.0
    %616 = vmatpush1.msra.mxu0 0.0
    %617 = vmatprep.subr.mxu0 0.0
    %618 = vmatpush1.msra.mxu0 0.0
    %619 = vmatprep.subr.mxu0 0.0
    %620 = vmatpush1.msra.mxu0 0.0
    %621 = vmatprep.subr.mxu0 0.0
    %622 = vmatpush1.msra.mxu0 0.0
    %623 = vmatprep.subr.mxu0 0.0
    %624 = vmatpush1.msra.mxu0 0.0
    %625 = vmatprep.subr.mxu0 0.0
    %626 = vmatpush1.msra.mxu0 0.0
    %627 = vmatprep.subr.mxu0 0.0
    %628 = vmatpush1.msra.mxu0 0.0
    %629 = vmatprep.subr.mxu0 0.0
    %630 = vmatpush1.msra.mxu0 0.0
    %631 = vmatprep.subr.mxu0 0.0
    %632 = vmatpush1.msra.mxu0 0.0
    %633 = vmatprep.subr.mxu0 0.0
    %634 = vmatpush1.msra.mxu0 0.0
    %635 = vmatprep.subr.mxu0 0.0
    %636 = vmatpush1.msra.mxu0 0.0
    %637 = vmatprep.subr.mxu0 0.0
    %638 = vmatpush1.msra.mxu0 0.0
    %639 = vmatprep.subr.mxu0 0.0
    %640 = vmatpush1.msra.mxu0 0.0
    %641 = vmatprep.subr.mxu0 0.0
    %642 = vmatpush1.msra.mxu0 0.0
    %643 = vmatprep.subr.mxu0 0.0
    %644 = vmatpush1.msra.mxu0 0.0
    %645 = vmatprep.subr.mxu0 0.0
    %646 = vmatpush1.msra.mxu0 0.0
    %647 = vmatprep.subr.mxu0 0.0
    %648 = vmatpush1.msra.mxu0 0.0
    %649 = vmatprep.subr.mxu0 0.0
    %650 = vmatpush1.msra.mxu0 0.0
    %651 = vmatprep.mubr.f32.mxu0 0.0
    %652 = vmatmul.mubr.f32.gmra.mrb[0].mxu0 %v582
    %v653 = vpop.f32.mrb[0].mxu0
    %v654 = vadd.f32 0.0, %v653
    %v655 = vpop.f32.mrb[0].mxu0
    %656 = vmatprep.mubr.f32.mxu0 0.0
    %657 = vmatmul.mubr.f32.gmra.mrb[0].mxu0 %v585
    %v658 = vpop.f32.mrb[0].mxu0
    %v659 = vadd.f32 0.0, %v658
    %v660 = vpop.f32.mrb[0].mxu0
    %661 = vdwg.mxu0
    %v662 = vadd.f32 %v569, %v654
    %v663 = vadd.f32 %v570, %v659
    %v664 = vmax.f32 %v662, 0.0
    %v665 = vmax.f32 %v663, 0.0
    %v666 = vsel %vm74, %v664, 0.0
    %667 = vadd.xlane.f32.xlu0 %v666
    %v668 = vpop.xlane.xlu0 %667
    %v669 = vsel %vm74, %v665, 0.0
    %670 = vadd.xlane.f32.xlu0 %v669
    %v671 = vpop.xlane.xlu0 %670
    %v672 = vmul.f32 %v668, %v353
    %v673 = vmul.f32 %v671, %v353
    %v674 = vsub.f32 %v664, %v672
    %v675 = vsub.f32 %v665, %v673
    %v676 = vmul.f32 %v674, %v674
    %v677 = vmul.f32 %v675, %v675
    %v678 = vsel %vm74, %v676, 0.0
    %679 = vadd.xlane.f32.xlu0 %v678
    %v680 = vpop.xlane.xlu0 %679
    %v681 = vsel %vm74, %v677, 0.0
    %682 = vadd.xlane.f32.xlu0 %v681
    %v683 = vpop.xlane.xlu0 %682
    %v684 = vmul.f32 %v680, %v353
    %v685 = vmul.f32 %v683, %v353
    %v686 = vadd.f32 %v684, 1e-05
    %v687 = vadd.f32 %v685, 1e-05
    %v688 = vrsqrt.pop %v686
    %v689 = vrsqrt.pop %v687
    %v690 = vmul.f32 %v674, %v688
    %v691 = vmul.f32 %v675, %v689
    %v692 = vmul.f32 %v690, %v377
    %v693 = vmul.f32 %v691, %v377
    %v694 = vadd.f32 %v692, %v383
    %v695 = vadd.f32 %v693, %v383
    %s696 = scalar_lea.vmem [#allocation7], 16
    %697 = vst.msk [vmem:[%s696] sm:$0xff] %vm74, %v694
    %698 = vst.msk [vmem:[%s696 + $0x8] sm:$0xff] %vm74, %v695
    // Predicated region
    $region22: #{tpu_custom_call.1} parent=1 // pred_check
      _
    $region23: #{tpu_custom_call.1} parent=1 // pred_check_branch
      %700 = sbr.rel (0) target = $region25
    $region24: #{tpu_custom_call.1} parent=1 // pred_region
      %s702 = ssub.s32 512, 512
      %703 = vsyncadd [#allocation4], %s702
      %s704 = sshll.u32 [#allocation7], 4
      %s705 = int_to_ptr.vmem [resolvable:$true] %s704
      %710 = dma.vmem_to_hbm [thread:$0]  %s705, 512, %s3, [#allocation4], 128, 128, 8
    $region25: #{tpu_custom_call.1} parent=1 // pred_fallthru
      _
    // Predicated region
    $region26: #{tpu_custom_call.1} parent=1 // pred_check
      _
    $region27: #{tpu_custom_call.1} parent=1 // pred_check_branch
      %712 = sbr.rel (0) target = $region29
    $region28: #{tpu_custom_call.1} parent=1 // pred_region
      %713 = dma.done [#allocation4], 512
    $region29: #{tpu_custom_call.1} parent=1 // pred_fallthru
      _
    %714 = vsyncpa [#allocation3], 1
    %715 = vsyncpa [#allocation6], 1
    %716 = vsyncpa [#allocation4], 1

</llo_original>
